<compile_context>
chip_gen: v7x
topology: tpu7x:2x2x1
jax: 0.10.0
libtpu: 0.0.40
codegen_flags: <defaults>
</compile_context>

<pallas_src>
import functools

import jax
import jax.numpy as jnp
from jax.experimental import pallas as pl
from jax.experimental.pallas import tpu as pltpu


def _unrolled_int_pow(x, n):
    """x**n for a static python int n >= 0, as trace-time-unrolled VPU multiplies."""
    result = None
    base = x
    while n:
        if n & 1:
            result = base if result is None else result * base
        n >>= 1
        if n:
            base = base * base
    return jnp.ones_like(x) if result is None else result


def _focal_loss_kernel(gamma, n_total, logits_ref, targets_ref, mask_ref,
                       alpha_ref, out_ref):
    step = pl.program_id(0)

    logits = logits_ref[...].astype(jnp.float32)        # [C, T] classes on sublanes
    tgt = targets_ref[...].astype(jnp.int32)            # [1, T] lane-dense
    msk = mask_ref[...].astype(jnp.float32)             # [1, T] (matches mask.float())
    c, t = logits.shape

    # One-hot over the (short) class/sublane axis — no dynamic gather on TPU.
    class_ids = jax.lax.broadcasted_iota(jnp.int32, (c, t), 0)
    onehot = (class_ids == tgt).astype(jnp.float32)     # [C, T]

    # Numerically-stable softmax pieces over the class axis.
    m = jnp.max(logits, axis=0, keepdims=True)          # [1, T]
    e = jnp.exp(logits - m)                             # [C, T]
    sum_e = jnp.sum(e, axis=0, keepdims=True)           # [1, T]
    logit_t = jnp.sum(logits * onehot, axis=0, keepdims=True)   # [1, T]

    # CE = -(log_softmax)_target ; pt = exp(-CE) exactly like the reference
    # ([1,T] EUP op — frees the busier VALU slot vs a [C,T] masked reduce).
    ce = m + jnp.log(sum_e) - logit_t                   # [1, T]
    pt = jnp.exp(-ce)                                   # [1, T]
    one_minus_pt = jnp.maximum(1.0 - pt, 0.0)           # clamp: pt can round above 1

    g = float(gamma)
    if g.is_integer() and g >= 0:
        focal = _unrolled_int_pow(one_minus_pt, int(g))
    else:
        focal = one_minus_pt ** g                       # non-integer gamma fallback

    # alpha.gather(0, targets) via the same one-hot; alpha is a [C, 1] column.
    at = jnp.sum(alpha_ref[...].astype(jnp.float32) * onehot, axis=0, keepdims=True)

    f = at * focal * ce * msk                           # [1, T]

    # Ragged-tail validity: SELECT (not multiply) so garbage/NaN in the partial
    # last block's out-of-bounds lanes cannot poison the sums.
    lane = jax.lax.broadcasted_iota(jnp.int32, (1, t), 1)
    valid = (step * t + lane) < n_total
    f = jnp.where(valid, f, 0.0)
    msk = jnp.where(valid, msk, 0.0)

    # Per-tile partials (cross-lane reduce lands on the otherwise idle XLU slot),
    # written to this step's own disjoint (8,128) output block.
    num_p = jnp.sum(f, keepdims=True)                   # (1, 1)
    den_p = jnp.sum(msk, keepdims=True)                 # (1, 1)
    row = jax.lax.broadcasted_iota(jnp.int32, (8, 128), 0)
    col = jax.lax.broadcasted_iota(jnp.int32, (8, 128), 1)
    blk = jnp.where((row == 0) & (col == 0), num_p, 0.0)
    blk = jnp.where((row == 0) & (col == 1), den_p, blk)
    out_ref[...] = blk


def focal_loss(inputs, targets, mask, gamma=2, alpha=None, tile_tokens=32768,
               inputs_class_major=False):
    """inputs: [B, S, C] float (or [C, N] if inputs_class_major), targets: [B, S] int,
    mask: [B, S] bool."""
    if inputs_class_major:
        c, n = inputs.shape
        logits = inputs                                  # already [C, N]
    else:
        b, s, c = inputs.shape
        n = b * s
        # TODO(synk): emit [C, N] upstream to skip this extra HBM transpose pass.
        logits = inputs.reshape(n, c).T                  # [C, N], keep incoming dtype

    tgt = targets.reshape(1, n)
    if not jnp.issubdtype(tgt.dtype, jnp.integer):
        tgt = tgt.astype(jnp.int32)                      # kernel casts to int32 anyway
    msk = mask.reshape(1, n)
    if msk.dtype == jnp.bool_:
        msk = msk.astype(jnp.int8)                       # 1-byte side stream

    # Mirror the PyTorch module's alpha handling.
    if isinstance(alpha, (float, int)) and not isinstance(alpha, bool):
        alpha_arr = jnp.array([alpha, 1.0 - alpha], jnp.float32)
    elif isinstance(alpha, (list, tuple)):
        alpha_arr = jnp.asarray(alpha, dtype=jnp.float32)
    elif alpha is None:
        alpha_arr = jnp.ones((c,), jnp.float32)          # alpha=None -> no reweighting
    else:
        alpha_arr = jnp.asarray(alpha, jnp.float32).reshape(-1)
    if alpha_arr.shape[0] < c:
        raise ValueError(
            f"alpha covers {alpha_arr.shape[0]} classes but inputs have {c}; the "
            "reference alpha.gather(0, targets) would fail for the missing classes")
    alpha_arr = alpha_arr[:c].reshape(c, 1)              # [C, 1] column

    # Tiny inputs (< one 128-lane block): pad once (negligible). Larger inputs are
    # never padded — the last grid block is partial and masked in-kernel.
    n_valid = n
    if n < 128:
        pad = 128 - n
        logits = jnp.pad(logits, ((0, 0), (0, pad)))
        tgt = jnp.pad(tgt, ((0, 0), (0, pad)))
        msk = jnp.pad(msk, ((0, 0), (0, pad)))
        n = 128

    # Lane tile: big (default 32768) to amortize grid-step overhead, multiple of 128,
    # no larger than the (128-rounded) token count.
    tile = min(int(tile_tokens), pl.cdiv(n, 128) * 128)
    tile = max(128, (tile // 128) * 128)
    grid = pl.cdiv(n, tile)

    kernel = functools.partial(_focal_loss_kernel, gamma, n_valid)

    partials = pl.pallas_call(
        kernel,
        out_shape=jax.ShapeDtypeStruct((grid * 8, 128), jnp.float32),
        grid_spec=pltpu.PrefetchScalarGridSpec(
            num_scalar_prefetch=0,
            grid=(grid,),
            in_specs=[
                pl.BlockSpec((c, tile), lambda i: (0, i)),   # logits [C, T] tile
                pl.BlockSpec((1, tile), lambda i: (0, i)),   # targets [1, T] tile
                pl.BlockSpec((1, tile), lambda i: (0, i)),   # mask [1, T] tile
                pl.BlockSpec((c, 1), lambda i: (0, 0)),      # alpha column (resident)
            ],
            out_specs=pl.BlockSpec((8, 128), lambda i: (i, 0)),  # per-tile partials
        ),
        compiler_params=pltpu.CompilerParams(
            dimension_semantics=("parallel",),               # dual-TC on v7x
            vmem_limit_bytes=40 * 1024 * 1024),              # 32K tiles safe on v5e too
    )(logits, tgt, msk, alpha_arr)

    partials = partials.reshape(grid, 8, 128)
    num = jnp.sum(partials[:, 0, 0])
    den = jnp.sum(partials[:, 0, 1])
    # Same semantics as the reference: divides by zero if every token is masked.
    return num / den


def _focal_loss_ref(inputs, targets, mask, gamma=2, alpha=None):
    """Pure-JAX reference mirroring the PyTorch forward."""
    b, s, c = inputs.shape
    x = inputs.reshape(-1, c).astype(jnp.float32)
    t = targets.reshape(-1)
    m = mask.reshape(-1).astype(jnp.float32)
    logp = jax.nn.log_softmax(x, axis=-1)
    ce = -jnp.take_along_axis(logp, t[:, None], axis=-1)[:, 0]
    pt = jnp.exp(-ce)
    f = (1.0 - pt) ** gamma * ce
    if alpha is not None:
        a = jnp.array(alpha, jnp.float32)
        f = a[t] * f
    f = f * m
    return f.sum() / m.sum()


if __name__ == "__main__":
    key = jax.random.PRNGKey(0)
    k1, k2, k3, k4, k5, k6 = jax.random.split(key, 6)

    # Case 1: shapes implied by the module (BERT-BiLSTM-CRF NER head), with alpha.
    B, S, C = 2, 8, 5
    gamma = 2
    alpha = [0.1, 0.2, 0.3, 0.25, 0.15]

    inputs = jax.random.normal(k1, (B, S, C), dtype=jnp.float32)
    targets = jax.random.randint(k2, (B, S), 0, C, dtype=jnp.int32)
    mask = jax.random.bernoulli(k3, 0.8, (B, S))
    mask = mask.at[:, 0].set(True)        # guarantee at least one valid token

    out = focal_loss(inputs, targets, mask, gamma=gamma, alpha=alpha)
    out = jax.block_until_ready(out)
    ref = _focal_loss_ref(inputs, targets, mask, gamma=gamma, alpha=alpha)
    assert jnp.allclose(out, ref, rtol=1e-5, atol=1e-6), (out, ref)

    # Case 2: multi-tile grid with a ragged (non multiple-of-tile) tail, alpha=None.
    B2, S2 = 4, 225                        # n = 900 tokens, tile 512 -> grid 2 + tail
    inputs2 = jax.random.normal(k4, (B2, S2, C), dtype=jnp.float32)
    targets2 = jax.random.randint(k5, (B2, S2), 0, C, dtype=jnp.int32)
    mask2 = jax.random.bernoulli(k6, 0.7, (B2, S2))
    mask2 = mask2.at[:, 0].set(True)

    out2 = focal_loss(inputs2, targets2, mask2, gamma=gamma, alpha=None,
                      tile_tokens=512)
    out2 = jax.block_until_ready(out2)
    ref2 = _focal_loss_ref(inputs2, targets2, mask2, gamma=gamma, alpha=None)
    assert jnp.allclose(out2, ref2, rtol=1e-5, atol=1e-6), (out2, ref2)

    print("KERNEL_OK")
</pallas_src>

<mosaic_0001>
module attributes {stable_mosaic.version = 11 : i64} {
  func.func @_focal_loss_kernel(%arg0: i32, %arg1: memref<5x128xf32, #tpu.memory_space<vmem>>, %arg2: memref<1x128xi32, #tpu.memory_space<vmem>>, %arg3: memref<1x128xi8, #tpu.memory_space<vmem>>, %arg4: memref<5x1xf32, #tpu.memory_space<vmem>>, %arg5: memref<8x128xf32, #tpu.memory_space<vmem>>) attributes {dimension_semantics = [#tpu.dimension_semantics<parallel>], iteration_bounds = array<i64: 1>, scalar_prefetch = 0 : i64, scratch_operands = 0 : i64, tpu.core_type = #tpu.core_type<tc>, window_params = [{transform_indices = @transform_0, window_bounds = array<i64: 5, 128>}, {transform_indices = @transform_1, window_bounds = array<i64: 1, 128>}, {transform_indices = @transform_2, window_bounds = array<i64: 1, 128>}, {pipeline_mode = #tpu.pipeline_mode<synchronous>, transform_indices = @transform_3, window_bounds = array<i64: 5, 1>}, {transform_indices = @transform_4, window_bounds = array<i64: 8, 128>}]} {
    %c0 = arith.constant 0 : index
    %c0_0 = arith.constant 0 : index
    %0 = vector.load %arg1[%c0, %c0_0] : memref<5x128xf32, #tpu.memory_space<vmem>>, vector<5x128xf32>
    %c0_1 = arith.constant 0 : index
    %c0_2 = arith.constant 0 : index
    %1 = vector.load %arg2[%c0_1, %c0_2] : memref<1x128xi32, #tpu.memory_space<vmem>>, vector<1x128xi32>
    %c0_3 = arith.constant 0 : index
    %c0_4 = arith.constant 0 : index
    %2 = vector.load %arg3[%c0_3, %c0_4] : memref<1x128xi8, #tpu.memory_space<vmem>>, vector<1x128xi8>
    %3 = arith.sitofp %2 : vector<1x128xi8> to vector<1x128xf32>
    %4 = tpu.iota {dimensions = array<i32: 0>} : vector<5x128xi32>
    %5 = vector.broadcast %1 : vector<1x128xi32> to vector<5x128xi32>
    %6 = arith.cmpi eq, %4, %5 : vector<5x128xi32>
    %7 = arith.extui %6 : vector<5x128xi1> to vector<5x128xi32>
    %8 = arith.sitofp %7 : vector<5x128xi32> to vector<5x128xf32>
    %cst = arith.constant dense<0xFF800000> : vector<128xf32>
    %9 = vector.multi_reduction <maximumf>, %0, %cst [0] : vector<5x128xf32> to vector<128xf32>
    %10 = vector.shape_cast %9 : vector<128xf32> to vector<1x128xf32>
    %11 = vector.broadcast %10 : vector<1x128xf32> to vector<5x128xf32>
    %12 = arith.subf %0, %11 : vector<5x128xf32>
    %13 = math.exp %12 : vector<5x128xf32>
    %cst_5 = arith.constant dense<0.000000e+00> : vector<128xf32>
    %14 = vector.multi_reduction <add>, %13, %cst_5 [0] : vector<5x128xf32> to vector<128xf32>
    %15 = vector.shape_cast %14 : vector<128xf32> to vector<1x128xf32>
    %16 = arith.mulf %0, %8 : vector<5x128xf32>
    %cst_6 = arith.constant dense<0.000000e+00> : vector<128xf32>
    %17 = vector.multi_reduction <add>, %16, %cst_6 [0] : vector<5x128xf32> to vector<128xf32>
    %18 = vector.shape_cast %17 : vector<128xf32> to vector<1x128xf32>
    %19 = math.log %15 : vector<1x128xf32>
    %20 = arith.addf %10, %19 : vector<1x128xf32>
    %21 = arith.subf %20, %18 : vector<1x128xf32>
    %cst_7 = arith.constant 0.000000e+00 : f32
    %22 = vector.broadcast %cst_7 : f32 to vector<1x128xf32>
    %23 = arith.subf %22, %21 : vector<1x128xf32>
    %24 = math.exp %23 : vector<1x128xf32>
    %cst_8 = arith.constant 1.000000e+00 : f32
    %25 = vector.broadcast %cst_8 : f32 to vector<1x128xf32>
    %26 = arith.subf %25, %24 : vector<1x128xf32>
    %cst_9 = arith.constant 0.000000e+00 : f32
    %27 = vector.broadcast %cst_9 : f32 to vector<1x128xf32>
    %28 = arith.maximumf %26, %27 : vector<1x128xf32>
    %29 = arith.mulf %28, %28 : vector<1x128xf32>
    %c0_10 = arith.constant 0 : index
    %c0_11 = arith.constant 0 : index
    %30 = vector.load %arg4[%c0_10, %c0_11] : memref<5x1xf32, #tpu.memory_space<vmem>>, vector<5x1xf32>
    %31 = vector.broadcast %30 : vector<5x1xf32> to vector<5x128xf32>
    %32 = arith.mulf %31, %8 : vector<5x128xf32>
    %cst_12 = arith.constant dense<0.000000e+00> : vector<128xf32>
    %33 = vector.multi_reduction <add>, %32, %cst_12 [0] : vector<5x128xf32> to vector<128xf32>
    %34 = vector.shape_cast %33 : vector<128xf32> to vector<1x128xf32>
    %35 = arith.mulf %34, %29 : vector<1x128xf32>
    %36 = arith.mulf %35, %21 : vector<1x128xf32>
    %37 = arith.mulf %36, %3 : vector<1x128xf32>
    %38 = tpu.iota {dimensions = array<i32: 1>} : vector<1x128xi32>
    %c128_i32 = arith.constant 128 : i32
    %39 = arith.muli %arg0, %c128_i32 : i32
    %40 = vector.broadcast %39 : i32 to vector<1x128xi32>
    %41 = arith.addi %40, %38 : vector<1x128xi32>
    %c16_i32 = arith.constant 16 : i32
    %42 = vector.broadcast %c16_i32 : i32 to vector<1x128xi32>
    %43 = arith.cmpi slt, %41, %42 : vector<1x128xi32>
    %cst_13 = arith.constant 0.000000e+00 : f32
    %44 = vector.broadcast %cst_13 : f32 to vector<1x128xf32>
    %45 = arith.select %43, %37, %44 : vector<1x128xi1>, vector<1x128xf32>
    %cst_14 = arith.constant 0.000000e+00 : f32
    %46 = vector.broadcast %cst_14 : f32 to vector<1x128xf32>
    %47 = arith.select %43, %3, %46 : vector<1x128xi1>, vector<1x128xf32>
    %48 = vector.shape_cast %45 : vector<1x128xf32> to vector<1x1x128xf32>
    %cst_15 = arith.constant dense<0.000000e+00> : vector<1xf32>
    %49 = vector.multi_reduction <add>, %48, %cst_15 [1, 2] : vector<1x1x128xf32> to vector<1xf32>
    %50 = vector.shape_cast %49 : vector<1xf32> to vector<1x1x1xf32>
    %51 = vector.extract %50[0, 0, 0] : f32 from vector<1x1x1xf32>
    %52 = vector.broadcast %51 : f32 to vector<1x1xf32>
    %53 = vector.shape_cast %47 : vector<1x128xf32> to vector<1x1x128xf32>
    %cst_16 = arith.constant dense<0.000000e+00> : vector<1xf32>
    %54 = vector.multi_reduction <add>, %53, %cst_16 [1, 2] : vector<1x1x128xf32> to vector<1xf32>
    %55 = vector.shape_cast %54 : vector<1xf32> to vector<1x1x1xf32>
    %56 = vector.extract %55[0, 0, 0] : f32 from vector<1x1x1xf32>
    %57 = vector.broadcast %56 : f32 to vector<1x1xf32>
    %58 = tpu.iota {dimensions = array<i32: 0>} : vector<8x128xi32>
    %59 = tpu.iota {dimensions = array<i32: 1>} : vector<8x128xi32>
    %c0_i32 = arith.constant 0 : i32
    %60 = vector.broadcast %c0_i32 : i32 to vector<8x128xi32>
    %61 = arith.cmpi eq, %58, %60 : vector<8x128xi32>
    %c0_i32_17 = arith.constant 0 : i32
    %62 = vector.broadcast %c0_i32_17 : i32 to vector<8x128xi32>
    %63 = arith.cmpi eq, %59, %62 : vector<8x128xi32>
    %64 = arith.andi %61, %63 : vector<8x128xi1>
    %cst_18 = arith.constant 0.000000e+00 : f32
    %65 = vector.shape_cast %52 : vector<1x1xf32> to vector<1x1xf32>
    %66 = vector.broadcast %65 : vector<1x1xf32> to vector<8x128xf32>
    %67 = vector.broadcast %cst_18 : f32 to vector<8x128xf32>
    %68 = arith.select %64, %66, %67 : vector<8x128xi1>, vector<8x128xf32>
    %c0_i32_19 = arith.constant 0 : i32
    %69 = vector.broadcast %c0_i32_19 : i32 to vector<8x128xi32>
    %70 = arith.cmpi eq, %58, %69 : vector<8x128xi32>
    %c1_i32 = arith.constant 1 : i32
    %71 = vector.broadcast %c1_i32 : i32 to vector<8x128xi32>
    %72 = arith.cmpi eq, %59, %71 : vector<8x128xi32>
    %73 = arith.andi %70, %72 : vector<8x128xi1>
    %74 = vector.shape_cast %57 : vector<1x1xf32> to vector<1x1xf32>
    %75 = vector.broadcast %74 : vector<1x1xf32> to vector<8x128xf32>
    %76 = arith.select %73, %75, %68 : vector<8x128xi1>, vector<8x128xf32>
    %c0_20 = arith.constant 0 : index
    %c0_21 = arith.constant 0 : index
    %77 = vector.load %arg5[%c0_20, %c0_21] : memref<8x128xf32, #tpu.memory_space<vmem>>, vector<8x128xf32>
    tpu.vector_store %arg5[%c0_20, %c0_21], %76 {strides = array<i32>} : memref<8x128xf32, #tpu.memory_space<vmem>>, vector<8x128xf32>,
    return
  }
  func.func @transform_0(%arg0: i32) -> (i32, i32) {
    %c0_i32 = arith.constant 0 : i32
    %c0_i32_0 = arith.constant 0 : i32
    return %c0_i32, %arg0 : i32, i32
  }
  func.func @transform_1(%arg0: i32) -> (i32, i32) {
    %c0_i32 = arith.constant 0 : i32
    %c0_i32_0 = arith.constant 0 : i32
    return %c0_i32, %arg0 : i32, i32
  }
  func.func @transform_2(%arg0: i32) -> (i32, i32) {
    %c0_i32 = arith.constant 0 : i32
    %c0_i32_0 = arith.constant 0 : i32
    return %c0_i32, %arg0 : i32, i32
  }
  func.func @transform_3(%arg0: i32) -> (i32, i32) {
    %c0_i32 = arith.constant 0 : i32
    %c0_i32_0 = arith.constant 0 : i32
    %c0_i32_1 = arith.constant 0 : i32
    return %c0_i32, %c0_i32_0 : i32, i32
  }
  func.func @transform_4(%arg0: i32) -> (i32, i32) {
    %c0_i32 = arith.constant 0 : i32
    %c0_i32_0 = arith.constant 0 : i32
    return %arg0, %c0_i32 : i32, i32
  }
}

</mosaic_0001>

<llo_original>
// kernel: tpu_custom_call.1
$region0: #{tpu_custom_call.1}
  #allocation0 [shape = 'u32[]', space=smem, size = 0x4, offset = 0x4, fixed_abs, tag = 'smem constant byte address 0x4 - core index']
  #allocation1 [shape = 'u32[144,128]{1,0:T(1,128)}', space=vmem, size = 0x12000, scoped, tag = 'internal scratch']
  %s0 = inlined_call_operand.vmem [shape: f32[5,128], index: 0, kind: input, shape index: {}]
  %s1 = inlined_call_operand.vmem [shape: s32[1,128], index: 1, kind: input, shape index: {}]
  %s2 = inlined_call_operand.vmem [shape: s8[1,128], index: 2, kind: input, shape index: {}]
  %s3 = inlined_call_operand.vmem [shape: f32[5,1], index: 3, kind: input, shape index: {}]
  %s4 = inlined_call_operand.hbm [shape: f32[8,128], index: 4, kind: output, shape index: {}]
  %s5 = sld [smem:[#allocation0]]
  $region26: #{tpu_custom_call.1} parent=0
    _
  %s7 = ssub.s32 1, %s5
  %s8 = scalar_select 0, %s7, %s5
  $region1: #{tpu_custom_call.1} parent=0
    #allocation2 [shape = 'u8[4096]{0}', space=vmem, size = 0x1000, scoped, tag = 'output window, operand 0, single buffered']
    #allocation3 [shape = 's32[1]{0}', space=sflag, size = 0x4, scoped, tag = 'scoped memory for tpu_custom_call.1']
    %9 = vsyncpa [#allocation3], 0
    // Predicated region
    $region2: #{tpu_custom_call.1} parent=1 // pred_check
      _
    $region3: #{tpu_custom_call.1} parent=1 // pred_check_branch
      %11 = sbr.rel (0) target = $region5
    $region4: #{tpu_custom_call.1} parent=1 // pred_region
      _
    $region5: #{tpu_custom_call.1} parent=1 // pred_fallthru
      _
    // Predicated region
    $region6: #{tpu_custom_call.1} parent=1 // pred_check
      _
    $region7: #{tpu_custom_call.1} parent=1 // pred_check_branch
      %13 = sbr.rel (0) target = $region9
    $region8: #{tpu_custom_call.1} parent=1 // pred_region
      _
    $region9: #{tpu_custom_call.1} parent=1 // pred_fallthru
      _
    // Predicated region
    $region10: #{tpu_custom_call.1} parent=1 // pred_check
      _
    $region11: #{tpu_custom_call.1} parent=1 // pred_check_branch
      %15 = sbr.rel (0) target = $region13
    $region12: #{tpu_custom_call.1} parent=1 // pred_region
      _
    $region13: #{tpu_custom_call.1} parent=1 // pred_fallthru
      _
    // Predicated region
    $region14: #{tpu_custom_call.1} parent=1 // pred_check
      _
    $region15: #{tpu_custom_call.1} parent=1 // pred_check_branch
      %17 = sbr.rel (0) target = $region17
    $region16: #{tpu_custom_call.1} parent=1 // pred_region
      _
    $region17: #{tpu_custom_call.1} parent=1 // pred_fallthru
      _
    %v18 = vld [vmem:[%s0] sm:$0x1f]
    %v19 = vld [vmem:[%s1] sm:$0x1]
    %v20 = vld [vmem:[%s2] sm:$0x1]
    %v21 = vunpack.c.0.s8 %v20
    %v22 = vcvt.s32.f32 %v21
    %v23 = vlaneseq
    %v24 = vshrl.u32 %v23, 7
    %v25 = vlaneseq
    %v26 = vshrl.u32 %v25, 7
    %v27 = vsub.s32 0, %v26
    %v28 = vrot.slane %v19, %v27
    %vm29 = vcmp.eq.s32.totalorder %v24, %v28
    %v30 = vsel %vm29, 1, 0
    %v31 = vcvt.s32.f32 %v30
    %vm32 = vcmask 1044480
    %v33 = vsel %vm32, %v18, -inf
    %v34 = vrot.slane %v33, 4
    %v35 = vmax.f32 %v33, %v34
    %v36 = vrot.slane %v35, 2
    %v37 = vmax.f32 %v35, %v36
    %v38 = vrot.slane %v37, 1
    %v39 = vmax.f32 %v37, %v38
    %v40 = vsub.f32 %v18, %v39
    %v41 = vmul.f32 %v40, 1.442695
    %v42 = vpow.pop %v41
    %v43 = vsel %vm32, %v42, 0.0
    %v44 = vrot.slane %v43, 4
    %v45 = vadd.f32 %v43, %v44
    %v46 = vrot.slane %v45, 2
    %v47 = vadd.f32 %v45, %v46
    %v48 = vrot.slane %v47, 1
    %v49 = vadd.f32 %v47, %v48
    %v50 = vmul.f32 %v18, %v31
    %v51 = vsel %vm32, %v50, 0.0
    %v52 = vrot.slane %v51, 4
    %v53 = vadd.f32 %v51, %v52
    %v54 = vrot.slane %v53, 2
    %v55 = vadd.f32 %v53, %v54
    %v56 = vrot.slane %v55, 1
    %v57 = vadd.f32 %v55, %v56
    %v58 = vlog2.pop %v49
    %v59 = vmul.f32 %v58, 0.6931472
    %v60 = vadd.f32 %v39, %v59
    %v61 = vsub.f32 %v60, %v57
    %v62 = vsub.f32 0.0, %v61
    %v63 = vmul.f32 %v62, 1.442695
    %v64 = vpow.pop %v63
    %v65 = vsub.f32 1.0, %v64
    %v66 = vmax.f32 %v65, 0.0
    %v67 = vmul.f32 %v66, %v66
    %v68 = vld [vmem:[%s3] sm:$0x1f]
    %70 = vset.pattern.permute.xlu0 0
    %71 = vperm.xlu0 %70, %v68
    %v72 = vpop.permute.xlu0 %71
    %v74 = vmul.f32 %v72, %v31
    %v75 = vsel %vm32, %v74, 0.0
    %v76 = vrot.slane %v75, 4
    %v77 = vadd.f32 %v75, %v76
    %v78 = vrot.slane %v77, 2
    %v79 = vadd.f32 %v77, %v78
    %v80 = vrot.slane %v79, 1
    %v81 = vadd.f32 %v79, %v80
    %v82 = vmul.f32 %v81, %v67
    %v83 = vmul.f32 %v82, %v61
    %v84 = vmul.f32 %v83, %v22
    %v85 = vlaneseq
    %v86 = vand.u32 %v85, 127
    %s87 = smul.u32 0, 128
    %v88 = vstv %s87
    %v89 = vadd.s32 %v88, %v86
    %vm90 = vcmp.lt.s32.totalorder %v89, 16
    %v91 = vsel %vm90, %v84, 0.0
    %v92 = vsel %vm90, %v22, 0.0
    %vm93 = vcmask 1040384
    %v94 = vsel %vm93, %v91, 0.0
    %95 = vadd.xlane.f32.xlu0 %v94
    %v96 = vpop.xlane.xlu0 %95
    %v97 = vrot.slane %v96, 4
    %v98 = vadd.f32 %v96, %v97
    %v99 = vrot.slane %v98, 2
    %v100 = vadd.f32 %v98, %v99
    %v101 = vrot.slane %v100, 1
    %v102 = vadd.f32 %v100, %v101
    %s103 = vtos %v102
    %v104 = vsel %vm93, %v92, 0.0
    %105 = vadd.xlane.f32.xlu0 %v104
    %v106 = vpop.xlane.xlu0 %105
    %v107 = vrot.slane %v106, 4
    %v108 = vadd.f32 %v106, %v107
    %v109 = vrot.slane %v108, 2
    %v110 = vadd.f32 %v108, %v109
    %v111 = vrot.slane %v110, 1
    %v112 = vadd.f32 %v110, %v111
    %s113 = vtos %v112
    %vm114 = vcmp.eq.s32.totalorder %v24, 0
    %vm115 = vcmp.eq.s32.totalorder %v86, 0
    %vm116 = vmand %vm114, %vm115
    %v117 = vstv %s103
    %v118 = vsel %vm116, %v117, 0.0
    %vm119 = vcmp.eq.s32.totalorder %v86, 1
    %vm120 = vmand %vm114, %vm119
    %v121 = vstv %s113
    %v122 = vsel %vm120, %v121, %v118
    %123 = vst [vmem:[#allocation2] sm:$0xff] %v122
    // Predicated region
    $region18: #{tpu_custom_call.1} parent=1 // pred_check
      _
    $region19: #{tpu_custom_call.1} parent=1 // pred_check_branch
      %125 = sbr.rel (0) target = $region21
    $region20: #{tpu_custom_call.1} parent=1 // pred_region
      %s127 = ssub.s32 128, 128
      %128 = vsyncadd [#allocation3], %s127
      %s130 = sshll.u32 [#allocation2], 4
      %s131 = int_to_ptr.vmem [resolvable:$true] %s130
      %133 = dma.vmem_to_hbm [thread:$0]  %s131, 128, %s4, [#allocation3]
    $region21: #{tpu_custom_call.1} parent=1 // pred_fallthru
      _
    // Predicated region
    $region22: #{tpu_custom_call.1} parent=1 // pred_check
      _
    $region23: #{tpu_custom_call.1} parent=1 // pred_check_branch
      %135 = sbr.rel (0) target = $region25
    $region24: #{tpu_custom_call.1} parent=1 // pred_region
      %136 = dma.done [#allocation3], 128
    $region25: #{tpu_custom_call.1} parent=1 // pred_fallthru
      _
    %137 = vsyncpa [#allocation3], 1

</llo_original>
